<compile_context>
chip_gen: v7x
topology: tpu7x:2x2x1
jax: 0.10.0
libtpu: 0.0.40
codegen_flags: <defaults>
</compile_context>

<pallas_src>
import math

import jax
import jax.numpy as jnp
from jax.experimental import pallas as pl
from jax.experimental.pallas import tpu as pltpu


def _temperature_kernel(inv_ref, x_ref, o_ref):
    # inv_ref: (1,) f32 scalar in SMEM holding 1/temperature (reciprocal is
    # hoisted to the wrapper).  Cast the scalar to the tile dtype so bf16
    # tiles stay bf16 on v6e/v7x; for f32 the cast is a no-op.
    scale = inv_ref[0].astype(x_ref.dtype)
    o_ref[...] = x_ref[...] * scale


_LANE_CANDIDATES = (8192, 4096, 2048, 1024, 512, 256, 128)
_MAX_LANE_TILE = 2048                 # lanes per block
_MIN_SPLIT_BYTES = 4 * 1024 * 1024    # only split rows for 2 TCs above this


def _chip_params():
    """(target_block_bytes, vmem_limit_bytes, num_tensorcores) per generation."""
    try:
        kind = jax.devices()[0].device_kind.lower()
    except Exception:  # pragma: no cover - defensive
        kind = ""
    is_v7 = ("v7" in kind) or ("7x" in kind)
    if is_v7:
        # ~3.2 TB/s HBM per TC: 8 MiB blocks keep per-step overhead ~5%.
        # in+out double-buffered = 32 MiB < 48 MiB scoped limit (64 MiB phys).
        return 8 * 1024 * 1024, 48 * 1024 * 1024, 2
    # v5e / v6e: 4 MiB blocks already sit at the ~85% HBM-roofline plateau;
    # bigger tiles or deeper buffering only burn VMEM.
    return 4 * 1024 * 1024, 32 * 1024 * 1024, 1


def temperature_forward(logits: jax.Array, temperature, *, donate_logits: bool = False) -> jax.Array:
    """Pallas TPU equivalent of acegen `Temperature`: logits / temperature."""
    orig_shape = logits.shape
    dtype = logits.dtype
    n = math.prod(orig_shape) if orig_shape else 1

    # Hoist the reciprocal: one scalar divide in the wrapper, the kernel does
    # only a broadcast multiply.  SMEM scalars are 32-bit.
    inv = (1.0 / jnp.asarray(temperature, dtype=jnp.float32)).reshape((1,))

    if n == 0:
        return logits

    flat = logits.reshape((n,))

    # --- Lane-dense 2D view [R, C], C a multiple of 128 ----------------------
    c = next((cand for cand in _LANE_CANDIDATES if n % cand == 0), None)
    if c is None:
        # No 128-aligned factorization: a standalone Pallas call would need a
        # pad + slice (~3x HBM traffic).  A single fused XLA elementwise op is
        # the cheapest correct option (1 read + 1 write).  Rare path.
        return (flat * inv[0].astype(dtype)).reshape(orig_shape)

    r = n // c
    x2d = flat.reshape((r, c))

    target_block_bytes, vmem_limit, num_tc = _chip_params()
    itemsize = jnp.dtype(dtype).itemsize
    # Sublane packing multiple: 8 for f32, 16 for bf16, 32 for int8/fp8.
    pack = 8 * max(1, 4 // itemsize)

    # Lane tile divides C (candidates are powers of two); row tile sized to the
    # per-chip block-byte target and rounded to the packing multiple.
    tc = min(c, _MAX_LANE_TILE)
    tm_cap = max(pack, (target_block_bytes // (tc * itemsize)) // pack * pack)
    tm = r if r <= tm_cap else tm_cap   # full extent is always a legal block dim

    # v7x: guarantee >=2 "parallel" blocks so both TensorCores get work, when
    # there is enough data to make the extra grid step worthwhile.
    if (num_tc >= 2
            and pl.cdiv(r, tm) * pl.cdiv(c, tc) < 2
            and r >= 2 * pack
            and r * c * itemsize >= _MIN_SPLIT_BYTES):
        tm = min(r, ((pl.cdiv(r, 2) + pack - 1) // pack) * pack)

    grid = (pl.cdiv(r, tm), pl.cdiv(c, tc))

    out2d = pl.pallas_call(
        _temperature_kernel,
        out_shape=jax.ShapeDtypeStruct((r, c), dtype),
        grid_spec=pl.GridSpec(
            grid=grid,
            in_specs=[
                pl.BlockSpec(memory_space=pltpu.SMEM),         # 1/T scalar
                pl.BlockSpec((tm, tc), lambda i, j: (i, j)),   # logits tile
            ],
            out_specs=pl.BlockSpec((tm, tc), lambda i, j: (i, j)),
        ),
        compiler_params=pltpu.CompilerParams(
            dimension_semantics=("parallel", "parallel"),
            vmem_limit_bytes=vmem_limit,
        ),
        # Optional: reuse the logits buffer for the output when the caller no
        # longer needs the un-scaled logits (halves HBM footprint).
        input_output_aliases=({1: 0} if donate_logits else {}),
    )(inv, x2d)

    return out2d.reshape(orig_shape)


if __name__ == "__main__":
    key = jax.random.PRNGKey(0)
    k1, k2, k3 = jax.random.split(key, 3)

    # RL inference shapes: batch=2, seq=8, vocab=32 (f32).
    logits = jax.random.normal(k1, (2, 8, 32), dtype=jnp.float32)
    temperature = jnp.float32(0.7)
    out = temperature_forward(logits, temperature)
    jax.block_until_ready(out)
    ref = logits / temperature
    assert out.shape == ref.shape and out.dtype == ref.dtype
    assert jnp.allclose(out, ref, rtol=1e-5, atol=1e-6), "mismatch vs reference (f32)"

    # bf16 path, multi-block lane grid: batch=4, seq=16, vocab=128.
    logits_bf16 = jax.random.normal(k2, (4, 16, 128), dtype=jnp.bfloat16)
    out_bf16 = temperature_forward(logits_bf16, jnp.float32(1.7))
    jax.block_until_ready(out_bf16)
    ref_bf16 = logits_bf16 / jnp.bfloat16(1.7)
    assert out_bf16.shape == ref_bf16.shape and out_bf16.dtype == ref_bf16.dtype
    assert jnp.allclose(
        out_bf16.astype(jnp.float32), ref_bf16.astype(jnp.float32),
        rtol=2e-2, atol=2e-2,
    ), "mismatch vs reference (bf16)"

    # Unaligned element count -> single fused XLA fallback (no pad/slice).
    logits_odd = jax.random.normal(k3, (3, 5, 7), dtype=jnp.float32)
    out_odd = temperature_forward(logits_odd, jnp.float32(1.3))
    jax.block_until_ready(out_odd)
    ref_odd = logits_odd / jnp.float32(1.3)
    assert out_odd.shape == ref_odd.shape and out_odd.dtype == ref_odd.dtype
    assert jnp.allclose(out_odd, ref_odd, rtol=1e-5, atol=1e-6), "mismatch (odd shape)"

    print("KERNEL_OK")
</pallas_src>

<mosaic_0001>
module attributes {stable_mosaic.version = 11 : i64} {
  func.func @_temperature_kernel(%arg0: i32, %arg1: i32, %arg2: memref<1xf32, #tpu.memory_space<smem>>, %arg3: memref<1x512xf32, #tpu.memory_space<vmem>>, %arg4: memref<1x512xf32, #tpu.memory_space<vmem>>) attributes {dimension_semantics = [#tpu.dimension_semantics<parallel>, #tpu.dimension_semantics<parallel>], iteration_bounds = array<i64: 1, 1>, scalar_prefetch = 0 : i64, scratch_operands = 0 : i64, tpu.core_type = #tpu.core_type<tc>, window_params = [{transform_indices = @transform_0, window_bounds = array<i64: 1>}, {transform_indices = @transform_1, window_bounds = array<i64: 1, 512>}, {transform_indices = @transform_2, window_bounds = array<i64: 1, 512>}]} {
    %c0 = arith.constant 0 : index
    %0 = memref.load %arg2[%c0] : memref<1xf32, #tpu.memory_space<smem>>
    %c0_0 = arith.constant 0 : index
    %c0_1 = arith.constant 0 : index
    %1 = vector.load %arg3[%c0_0, %c0_1] : memref<1x512xf32, #tpu.memory_space<vmem>>, vector<1x512xf32>
    %2 = vector.broadcast %0 : f32 to vector<1x512xf32>
    %3 = arith.mulf %1, %2 : vector<1x512xf32>
    %c0_2 = arith.constant 0 : index
    %c0_3 = arith.constant 0 : index
    %4 = vector.load %arg4[%c0_2, %c0_3] : memref<1x512xf32, #tpu.memory_space<vmem>>, vector<1x512xf32>
    tpu.vector_store %arg4[%c0_2, %c0_3], %3 {strides = array<i32>} : memref<1x512xf32, #tpu.memory_space<vmem>>, vector<1x512xf32>,
    return
  }
  func.func @transform_0(%arg0: i32, %arg1: i32) -> i32 {
    %c0_i32 = arith.constant 0 : i32
    %c0_i32_0 = arith.constant 0 : i32
    return %c0_i32 : i32
  }
  func.func @transform_1(%arg0: i32, %arg1: i32) -> (i32, i32) {
    %c0_i32 = arith.constant 0 : i32
    return %arg0, %arg1 : i32, i32
  }
  func.func @transform_2(%arg0: i32, %arg1: i32) -> (i32, i32) {
    %c0_i32 = arith.constant 0 : i32
    return %arg0, %arg1 : i32, i32
  }
}

</mosaic_0001>

<llo_original>
// kernel: tpu_custom_call.1
$region0: #{tpu_custom_call.1}
  #allocation0 [shape = 'u32[]', space=smem, size = 0x4, offset = 0x4, fixed_abs, tag = 'smem constant byte address 0x4 - core index']
  #allocation1 [shape = 'u32[144,128]{1,0:T(1,128)}', space=vmem, size = 0x12000, scoped, tag = 'internal scratch']
  #allocation2 [shape = 'f32[1]{0:T(128)S(6)}', space=smem, size = 0x200, scoped, tag = 'scoped memory for tpu_custom_call.1']
  %s0 = inlined_call_operand.<no memory space> [shape: f32[1], index: 0, kind: input, shape index: {}]
  %s1 = inlined_call_operand.hbm [shape: f32[1,512], index: 1, kind: input, shape index: {}]
  %s2 = inlined_call_operand.hbm [shape: f32[1,512], index: 2, kind: output, shape index: {}]
  %s3 = sld [smem:[#allocation0]]
  $region22: #{tpu_custom_call.1} parent=0
    _
  %s5 = ssub.s32 1, %s3
  %s6 = scalar_select 0, %s5, %s3
  %7 = sst [smem:[#allocation2]] %s0
  $region1: #{tpu_custom_call.1} parent=0
    #allocation3 [shape = 'u8[2048]{0}', space=vmem, size = 0x800, scoped, tag = 'input window, operand 1, single buffered']
    #allocation4 [shape = 's32[1]{0}', space=sflag, size = 0x4, scoped, tag = 'scoped memory for tpu_custom_call.1']
    #allocation5 [shape = 's32[1]{0}', space=sflag, size = 0x4, scoped, tag = 'scoped memory for tpu_custom_call.1']
    #allocation6 [shape = 'u8[2048]{0}', space=vmem, size = 0x800, scoped, tag = 'output window, operand 0, single buffered']
    %8 = vsyncpa [#allocation4], 0
    %9 = vsyncpa [#allocation5], 0
    // Predicated region
    $region2: #{tpu_custom_call.1} parent=1 // pred_check
      _
    $region3: #{tpu_custom_call.1} parent=1 // pred_check_branch
      %11 = sbr.rel (0) target = $region5
    $region4: #{tpu_custom_call.1} parent=1 // pred_region
      _
    $region5: #{tpu_custom_call.1} parent=1 // pred_fallthru
      _
    // Predicated region
    $region6: #{tpu_custom_call.1} parent=1 // pred_check
      _
    $region7: #{tpu_custom_call.1} parent=1 // pred_check_branch
      %13 = sbr.rel (0) target = $region9
    $region8: #{tpu_custom_call.1} parent=1 // pred_region
      %s15 = ssub.s32 64, 64
      %16 = vsyncadd [#allocation4], %s15
      %s18 = sshll.u32 [#allocation3], 4
      %s19 = int_to_ptr.vmem [resolvable:$true] %s18
      %21 = dma.hbm_to_vmem [thread:$0]  %s1, 64, %s19, [#allocation4]
    $region9: #{tpu_custom_call.1} parent=1 // pred_fallthru
      _
    // Predicated region
    $region10: #{tpu_custom_call.1} parent=1 // pred_check
      _
    $region11: #{tpu_custom_call.1} parent=1 // pred_check_branch
      %23 = sbr.rel (0) target = $region13
    $region12: #{tpu_custom_call.1} parent=1 // pred_region
      %24 = dma.done [#allocation4], 64
    $region13: #{tpu_custom_call.1} parent=1 // pred_fallthru
      _
    %s25 = sld [smem:[#allocation2]]
    %v26 = vld [vmem:[#allocation3] sm:$0xf]
    %v27 = vstv %s25
    %v28 = vmul.f32 %v26, %v27
    %v29 = vlaneseq
    %vm30 = vcmp.ge.s32.totalorder %v29, 0
    %vm31 = vcmp.lt.s32.totalorder %v29, 512
    %vm32 = vmand %vm30, %vm31
    %33 = vst.msk [vmem:[#allocation6] sm:$0xf] %vm32, %v28
    // Predicated region
    $region14: #{tpu_custom_call.1} parent=1 // pred_check
      _
    $region15: #{tpu_custom_call.1} parent=1 // pred_check_branch
      %35 = sbr.rel (0) target = $region17
    $region16: #{tpu_custom_call.1} parent=1 // pred_region
      %s37 = ssub.s32 64, 64
      %38 = vsyncadd [#allocation5], %s37
      %s40 = sshll.u32 [#allocation6], 4
      %s41 = int_to_ptr.vmem [resolvable:$true] %s40
      %43 = dma.vmem_to_hbm [thread:$0]  %s41, 64, %s2, [#allocation5]
    $region17: #{tpu_custom_call.1} parent=1 // pred_fallthru
      _
    // Predicated region
    $region18: #{tpu_custom_call.1} parent=1 // pred_check
      _
    $region19: #{tpu_custom_call.1} parent=1 // pred_check_branch
      %45 = sbr.rel (0) target = $region21
    $region20: #{tpu_custom_call.1} parent=1 // pred_region
      %46 = dma.done [#allocation5], 64
    $region21: #{tpu_custom_call.1} parent=1 // pred_fallthru
      _
    %47 = vsyncpa [#allocation4], 1
    %48 = vsyncpa [#allocation5], 1

</llo_original>
